<compile_context>
chip_gen: v7x
topology: tpu7x:2x2x1
jax: 0.10.0
libtpu: 0.0.40
codegen_flags: <defaults>
</compile_context>

<pallas_src>
import functools

import jax
import jax.numpy as jnp
from jax.experimental import pallas as pl
from jax.experimental.pallas import tpu as pltpu


# ----------------------------- kernel ---------------------------------------


def actor_critic_kernel(x_ref, w1_ref, b1_ref, w2_ref, b2_ref, out_ref):
    # x_ref  : [TILE_B, S]      (no feature padding; full-extent last dim) - pipelined
    # w1_ref : [S, H2_pad]      ([Wa1 | Wc1], zero-padded hidden cols)     - resident
    # b1_ref : [1, H2_pad]      ([ba1 | bc1 | 0...], f32)                  - resident
    # w2_ref : [H2_pad, A+1]    (block-diagonal [Wa2 ; Wc2])               - resident
    # b2_ref : [1, A+1]         ([ba2 | bc2], f32)                         - resident
    # out_ref: [TILE_B, A+1]    (cols 0..A-1 = logits, col A = value)
    h = jnp.dot(x_ref[...], w1_ref[...], preferred_element_type=jnp.float32)
    h = jnp.maximum(h + b1_ref[...], 0.0)
    out = jnp.dot(h.astype(w2_ref.dtype), w2_ref[...],
                  preferred_element_type=jnp.float32)
    out_ref[...] = (out + b2_ref[...]).astype(out_ref.dtype)


# --------------------------- host-side helpers -------------------------------


def _round_up(x, m):
    return ((x + m - 1) // m) * m


def init_params(key, state_dim, action_dim, hidden_size):
    """PyTorch-like uniform fan-in init. Weights stored [in, out], biases [1, out]."""
    keys = jax.random.split(key, 8)

    def lin(kw, kb, fan_in, fan_out):
        bound = 1.0 / jnp.sqrt(fan_in)
        w = jax.random.uniform(kw, (fan_in, fan_out), jnp.float32, -bound, bound)
        b = jax.random.uniform(kb, (1, fan_out), jnp.float32, -bound, bound)
        return w, b

    wa1, ba1 = lin(keys[0], keys[1], state_dim, hidden_size)
    wa2, ba2 = lin(keys[2], keys[3], hidden_size, action_dim)
    wc1, bc1 = lin(keys[4], keys[5], state_dim, hidden_size)
    wc2, bc2 = lin(keys[6], keys[7], hidden_size, 1)
    return dict(wa1=wa1, ba1=ba1, wa2=wa2, ba2=ba2,
                wc1=wc1, bc1=bc1, wc2=wc2, bc2=bc2)


def pack_params(params, state_dim, action_dim, hidden_size, dtype=jnp.float32):
    """Pack the 8 actor/critic tensors into 4 small resident slabs.

    All padding is zero, which is exact: padded hidden columns produce
    ReLU(0 + 0) = 0 and hit zero rows of W2.

      W1 [S, H2_pad]    cols 0..H-1 = Wa1, cols H..2H-1 = Wc1
      b1 [1, H2_pad]    [ba1 | bc1 | 0]
      W2 [H2_pad, A+1]  rows 0..H-1 cols 0..A-1 = Wa2 ; rows H..2H-1 col A = Wc2
      b2 [1, A+1]       [ba2 | bc2]

    Weights may be cast to bf16 (dtype=jnp.bfloat16); biases stay f32 and are
    added to the f32 MXU accumulator in-kernel.
    """
    H = hidden_size
    H2 = 2 * H
    H2_pad = _round_up(H2, 128)  # lane-align hidden dim (tiny, resident weights only)
    # TODO(synk): on v6e/v7x pad H2 to a multiple of 256 if hidden_size ever grows
    # enough for the kernel to become MXU-bound; irrelevant at these sizes.
    OUT = action_dim + 1         # full-extent output block: no 128-lane padding

    w1 = jnp.zeros((state_dim, H2_pad), jnp.float32)
    w1 = w1.at[:, :H].set(params["wa1"])
    w1 = w1.at[:, H:H2].set(params["wc1"])

    b1 = jnp.zeros((1, H2_pad), jnp.float32)
    b1 = b1.at[:, :H].set(params["ba1"])
    b1 = b1.at[:, H:H2].set(params["bc1"])

    w2 = jnp.zeros((H2_pad, OUT), jnp.float32)
    w2 = w2.at[:H, :action_dim].set(params["wa2"])
    w2 = w2.at[H:H2, action_dim].set(params["wc2"][:, 0])

    b2 = jnp.zeros((1, OUT), jnp.float32)
    b2 = b2.at[:, :action_dim].set(params["ba2"])
    b2 = b2.at[:, action_dim].set(params["bc2"][0, 0])

    return w1.astype(dtype), b1, w2.astype(dtype), b2


@functools.partial(jax.jit, static_argnames=("tile_b",))
def actor_critic_forward(x, w1, b1, w2, b2, *, tile_b=1024):
    """x: [B, state_dim]. w1/b1/w2/b2: slabs from pack_params.

    Returns (logits [B, action_dim], value [B, 1]) in float32.
    """
    B, state_dim = x.shape
    assert w1.shape[0] == state_dim, "packed w1 does not match x's state_dim"
    H2_pad = w1.shape[1]
    OUT = w2.shape[1]
    action_dim = OUT - 1

    # Batch tile: multiple of 16 sublanes (valid for f32 and bf16), clamped to the
    # padded batch. If the grid would be a single step, halve the tile so both of
    # v7x's TensorCores get work (no-op on 1-TC v5e/v6e).
    tile_b = max(16, min(_round_up(tile_b, 16), _round_up(B, 16)))
    if _round_up(B, tile_b) == tile_b and tile_b >= 32:
        tile_b = _round_up(-(-tile_b // 2), 16)
    B_pad = _round_up(B, tile_b)

    # Pad only the batch dim (padded rows are sliced away after the call).
    x_pad = jnp.pad(x.astype(w1.dtype), ((0, B_pad - B), (0, 0)))

    grid = (B_pad // tile_b,)

    itemsize = jnp.dtype(w1.dtype).itemsize
    cost = pl.CostEstimate(
        flops=2 * B_pad * state_dim * H2_pad + 2 * B_pad * H2_pad * OUT,
        transcendentals=0,
        bytes_accessed=(B_pad * state_dim * itemsize
                        + (w1.size + w2.size) * itemsize
                        + (b1.size + b2.size) * 4
                        + B_pad * OUT * 4),
    )

    out = pl.pallas_call(
        actor_critic_kernel,
        out_shape=jax.ShapeDtypeStruct((B_pad, OUT), jnp.float32),
        grid=grid,
        in_specs=[
            pl.BlockSpec((tile_b, state_dim), lambda i: (i, 0)),  # x: pipelined
            pl.BlockSpec((state_dim, H2_pad), lambda i: (0, 0)),  # W1: resident
            pl.BlockSpec((1, H2_pad), lambda i: (0, 0)),          # b1: resident
            pl.BlockSpec((H2_pad, OUT), lambda i: (0, 0)),        # W2: resident
            pl.BlockSpec((1, OUT), lambda i: (0, 0)),             # b2: resident
        ],
        out_specs=pl.BlockSpec((tile_b, OUT), lambda i: (i, 0)),
        compiler_params=pltpu.CompilerParams(
            dimension_semantics=("parallel",),  # shard batch over v7x's 2 TCs
        ),
        cost_estimate=cost,
    )(x_pad, w1, b1, w2, b2)

    logits = out[:B, :action_dim]
    value = out[:B, action_dim:]
    return logits, value


def reference_forward(x, p):
    h_a = jnp.maximum(x @ p["wa1"] + p["ba1"], 0.0)
    logits = h_a @ p["wa2"] + p["ba2"]
    h_c = jnp.maximum(x @ p["wc1"] + p["bc1"], 0.0)
    value = h_c @ p["wc2"] + p["bc2"]
    return logits, value


# ----------------------------------- demo ------------------------------------

if __name__ == "__main__":
    state_dim, action_dim, hidden_size = 4, 6, 32
    batch = 2

    key = jax.random.PRNGKey(0)
    kx, kx2, kp = jax.random.split(key, 3)
    x = jax.random.normal(kx, (batch, state_dim), jnp.float32)
    params = init_params(kp, state_dim, action_dim, hidden_size)

    # --- f32 path (bit-faithful to the PyTorch module) ---
    w1, b1, w2, b2 = pack_params(params, state_dim, action_dim, hidden_size,
                                 dtype=jnp.float32)
    logits, value = actor_critic_forward(x, w1, b1, w2, b2)
    jax.block_until_ready((logits, value))

    ref_logits, ref_value = reference_forward(x, params)
    assert logits.shape == (batch, action_dim)
    assert value.shape == (batch, 1)
    assert jnp.allclose(logits, ref_logits, atol=1e-5, rtol=1e-5)
    assert jnp.allclose(value, ref_value, atol=1e-5, rtol=1e-5)

    # --- bf16 weights/activations, f32 accumulate; larger batch -> multi-step grid ---
    xb = jax.random.normal(kx2, (100, state_dim), jnp.float32)
    w1b, b1b, w2b, b2b = pack_params(params, state_dim, action_dim, hidden_size,
                                     dtype=jnp.bfloat16)
    lg_b, vl_b = actor_critic_forward(xb, w1b, b1b, w2b, b2b, tile_b=64)
    jax.block_until_ready((lg_b, vl_b))
    rlg, rvl = reference_forward(xb, params)
    assert lg_b.shape == (100, action_dim) and vl_b.shape == (100, 1)
    assert jnp.allclose(lg_b, rlg, atol=1e-1, rtol=1e-1)
    assert jnp.allclose(vl_b, rvl, atol=1e-1, rtol=1e-1)

    print("KERNEL_OK")
</pallas_src>

<mosaic_0001>
module attributes {stable_mosaic.version = 11 : i64} {
  func.func @actor_critic_kernel(%arg0: i32, %arg1: memref<16x4xf32, #tpu.memory_space<vmem>>, %arg2: memref<4x128xf32, #tpu.memory_space<vmem>>, %arg3: memref<1x128xf32, #tpu.memory_space<vmem>>, %arg4: memref<128x7xf32, #tpu.memory_space<vmem>>, %arg5: memref<1x7xf32, #tpu.memory_space<vmem>>, %arg6: memref<16x7xf32, #tpu.memory_space<vmem>>) attributes {dimension_semantics = [#tpu.dimension_semantics<parallel>], iteration_bounds = array<i64: 1>, scalar_prefetch = 0 : i64, scratch_operands = 0 : i64, tpu.core_type = #tpu.core_type<tc>, window_params = [{transform_indices = @transform_0, window_bounds = array<i64: 16, 4>}, {pipeline_mode = #tpu.pipeline_mode<synchronous>, transform_indices = @transform_1, window_bounds = array<i64: 4, 128>}, {pipeline_mode = #tpu.pipeline_mode<synchronous>, transform_indices = @transform_2, window_bounds = array<i64: 1, 128>}, {pipeline_mode = #tpu.pipeline_mode<synchronous>, transform_indices = @transform_3, window_bounds = array<i64: 128, 7>}, {pipeline_mode = #tpu.pipeline_mode<synchronous>, transform_indices = @transform_4, window_bounds = array<i64: 1, 7>}, {transform_indices = @transform_5, window_bounds = array<i64: 16, 7>}]} {
    %c0 = arith.constant 0 : index
    %c0_0 = arith.constant 0 : index
    %0 = vector.load %arg1[%c0, %c0_0] : memref<16x4xf32, #tpu.memory_space<vmem>>, vector<16x4xf32>
    %c0_1 = arith.constant 0 : index
    %c0_2 = arith.constant 0 : index
    %1 = vector.load %arg2[%c0_1, %c0_2] : memref<4x128xf32, #tpu.memory_space<vmem>>, vector<4x128xf32>
    %cst = arith.constant dense<0.000000e+00> : vector<16x128xf32>
    %2 = tpu.matmul %0, %1, %cst {dimension_numbers = #tpu.dot_dimension_numbers<[1], [0], [0], [1], [0, 0, 1, 1], [], []>} : vector<16x4xf32>, vector<4x128xf32>, vector<16x128xf32> -> vector<16x128xf32>
    %c0_3 = arith.constant 0 : index
    %c0_4 = arith.constant 0 : index
    %3 = vector.load %arg3[%c0_3, %c0_4] : memref<1x128xf32, #tpu.memory_space<vmem>>, vector<1x128xf32>
    %4 = vector.broadcast %3 : vector<1x128xf32> to vector<16x128xf32>
    %5 = arith.addf %2, %4 : vector<16x128xf32>
    %cst_5 = arith.constant 0.000000e+00 : f32
    %6 = vector.broadcast %cst_5 : f32 to vector<16x128xf32>
    %7 = arith.maximumf %5, %6 : vector<16x128xf32>
    %c0_6 = arith.constant 0 : index
    %c0_7 = arith.constant 0 : index
    %8 = vector.load %arg4[%c0_6, %c0_7] : memref<128x7xf32, #tpu.memory_space<vmem>>, vector<128x7xf32>
    %cst_8 = arith.constant dense<0.000000e+00> : vector<16x7xf32>
    %9 = tpu.matmul %7, %8, %cst_8 {dimension_numbers = #tpu.dot_dimension_numbers<[1], [0], [0], [1], [0, 0, 1, 1], [], []>} : vector<16x128xf32>, vector<128x7xf32>, vector<16x7xf32> -> vector<16x7xf32>
    %c0_9 = arith.constant 0 : index
    %c0_10 = arith.constant 0 : index
    %10 = vector.load %arg5[%c0_9, %c0_10] : memref<1x7xf32, #tpu.memory_space<vmem>>, vector<1x7xf32>
    %11 = vector.broadcast %10 : vector<1x7xf32> to vector<16x7xf32>
    %12 = arith.addf %9, %11 : vector<16x7xf32>
    %c0_11 = arith.constant 0 : index
    %c0_12 = arith.constant 0 : index
    %13 = vector.load %arg6[%c0_11, %c0_12] : memref<16x7xf32, #tpu.memory_space<vmem>>, vector<16x7xf32>
    tpu.vector_store %arg6[%c0_11, %c0_12], %12 {strides = array<i32>} : memref<16x7xf32, #tpu.memory_space<vmem>>, vector<16x7xf32>,
    return
  }
  func.func @transform_0(%arg0: i32) -> (i32, i32) {
    %c0_i32 = arith.constant 0 : i32
    %c0_i32_0 = arith.constant 0 : i32
    return %arg0, %c0_i32 : i32, i32
  }
  func.func @transform_1(%arg0: i32) -> (i32, i32) {
    %c0_i32 = arith.constant 0 : i32
    %c0_i32_0 = arith.constant 0 : i32
    %c0_i32_1 = arith.constant 0 : i32
    return %c0_i32, %c0_i32_0 : i32, i32
  }
  func.func @transform_2(%arg0: i32) -> (i32, i32) {
    %c0_i32 = arith.constant 0 : i32
    %c0_i32_0 = arith.constant 0 : i32
    %c0_i32_1 = arith.constant 0 : i32
    return %c0_i32, %c0_i32_0 : i32, i32
  }
  func.func @transform_3(%arg0: i32) -> (i32, i32) {
    %c0_i32 = arith.constant 0 : i32
    %c0_i32_0 = arith.constant 0 : i32
    %c0_i32_1 = arith.constant 0 : i32
    return %c0_i32, %c0_i32_0 : i32, i32
  }
  func.func @transform_4(%arg0: i32) -> (i32, i32) {
    %c0_i32 = arith.constant 0 : i32
    %c0_i32_0 = arith.constant 0 : i32
    %c0_i32_1 = arith.constant 0 : i32
    return %c0_i32, %c0_i32_0 : i32, i32
  }
  func.func @transform_5(%arg0: i32) -> (i32, i32) {
    %c0_i32 = arith.constant 0 : i32
    %c0_i32_0 = arith.constant 0 : i32
    return %arg0, %c0_i32 : i32, i32
  }
}

</mosaic_0001>

<llo_original>
// kernel: actor_critic_forward.1
$region0: #{actor_critic_forward.1}
  #allocation0 [shape = 'u32[]', space=smem, size = 0x4, offset = 0x4, fixed_abs, tag = 'smem constant byte address 0x4 - core index']
  #allocation1 [shape = 'u32[144,128]{1,0:T(1,128)}', space=vmem, size = 0x12000, scoped, tag = 'internal scratch']
  %s0 = inlined_call_operand.vmem [shape: f32[16,4], index: 0, kind: input, shape index: {}]
  %s1 = inlined_call_operand.vmem [shape: f32[4,128], index: 1, kind: input, shape index: {}]
  %s2 = inlined_call_operand.vmem [shape: f32[1,128], index: 2, kind: input, shape index: {}]
  %s3 = inlined_call_operand.vmem [shape: f32[128,7], index: 3, kind: input, shape index: {}]
  %s4 = inlined_call_operand.vmem [shape: f32[1,7], index: 4, kind: input, shape index: {}]
  %s5 = inlined_call_operand.vmem [shape: f32[16,7], index: 5, kind: output, shape index: {}]
  %s6 = sld [smem:[#allocation0]]
  $region30: #{actor_critic_forward.1} parent=0
    _
  %s8 = ssub.s32 1, %s6
  %s9 = scalar_select 0, %s8, %s6
  // Predicated region
  $region2: #{actor_critic_forward.1} parent=0 // pred_check
    _
  $region3: #{actor_critic_forward.1} parent=0 // pred_check_branch
    %11 = sbr.rel (0) target = $region5
  $region4: #{actor_critic_forward.1} parent=0 // pred_region
    _
  $region5: #{actor_critic_forward.1} parent=0 // pred_fallthru
    _
  // Predicated region
  $region6: #{actor_critic_forward.1} parent=0 // pred_check
    _
  $region7: #{actor_critic_forward.1} parent=0 // pred_check_branch
    %13 = sbr.rel (0) target = $region9
  $region8: #{actor_critic_forward.1} parent=0 // pred_region
    _
  $region9: #{actor_critic_forward.1} parent=0 // pred_fallthru
    _
  // Predicated region
  $region10: #{actor_critic_forward.1} parent=0 // pred_check
    _
  $region11: #{actor_critic_forward.1} parent=0 // pred_check_branch
    %15 = sbr.rel (0) target = $region13
  $region12: #{actor_critic_forward.1} parent=0 // pred_region
    _
  $region13: #{actor_critic_forward.1} parent=0 // pred_fallthru
    _
  // Predicated region
  $region14: #{actor_critic_forward.1} parent=0 // pred_check
    _
  $region15: #{actor_critic_forward.1} parent=0 // pred_check_branch
    %17 = sbr.rel (0) target = $region17
  $region16: #{actor_critic_forward.1} parent=0 // pred_region
    _
  $region17: #{actor_critic_forward.1} parent=0 // pred_fallthru
    _
  // Predicated region
  $region18: #{actor_critic_forward.1} parent=0 // pred_check
    _
  $region19: #{actor_critic_forward.1} parent=0 // pred_check_branch
    %19 = sbr.rel (0) target = $region21
  $region20: #{actor_critic_forward.1} parent=0 // pred_region
    _
  $region21: #{actor_critic_forward.1} parent=0 // pred_fallthru
    _
  %v20 = vld [vmem:[%s0] sm:$0xff]
  %v21 = vld [vmem:[%s0 + $0x8] sm:$0xff]
  %v22 = vld [vmem:[%s1] sm:$0xf]
  %v23 = vld [vmem:[%s2] sm:$0x1]
  %v25 = vlaneseq
  %v26 = vshrl.u32 %v25, 7
  %v27 = vsub.s32 0, %v26
  %v28 = vrot.slane %v23, %v27
  %vm30 = vcmask 31744
  %v32 = vsel %vm30, %v20, 0
  %v35 = vsel %vm30, %v21, 0
  %vm37 = vcmask 1043456
  %v39 = vsel %vm37, %v22, 0
  %41 = vmatprep.subr.mxu0 0.0
  %42 = vmatpush1.msra.mxu0 %v39
  %43 = vmatprep.subr.mxu0 0.0
  %44 = vmatpush1.msra.mxu0 0.0
  %45 = vmatprep.subr.mxu0 0.0
  %46 = vmatpush1.msra.mxu0 0.0
  %47 = vmatprep.subr.mxu0 0.0
  %48 = vmatpush1.msra.mxu0 0.0
  %49 = vmatprep.subr.mxu0 0.0
  %50 = vmatpush1.msra.mxu0 0.0
  %51 = vmatprep.subr.mxu0 0.0
  %52 = vmatpush1.msra.mxu0 0.0
  %53 = vmatprep.subr.mxu0 0.0
  %54 = vmatpush1.msra.mxu0 0.0
  %55 = vmatprep.subr.mxu0 0.0
  %56 = vmatpush1.msra.mxu0 0.0
  %57 = vmatprep.subr.mxu0 0.0
  %58 = vmatpush1.msra.mxu0 0.0
  %59 = vmatprep.subr.mxu0 0.0
  %60 = vmatpush1.msra.mxu0 0.0
  %61 = vmatprep.subr.mxu0 0.0
  %62 = vmatpush1.msra.mxu0 0.0
  %63 = vmatprep.subr.mxu0 0.0
  %64 = vmatpush1.msra.mxu0 0.0
  %65 = vmatprep.subr.mxu0 0.0
  %66 = vmatpush1.msra.mxu0 0.0
  %67 = vmatprep.subr.mxu0 0.0
  %68 = vmatpush1.msra.mxu0 0.0
  %69 = vmatprep.subr.mxu0 0.0
  %70 = vmatpush1.msra.mxu0 0.0
  %71 = vmatprep.subr.mxu0 0.0
  %72 = vmatpush1.msra.mxu0 0.0
  %73 = vmatprep.subr.mxu0 0.0
  %74 = vmatpush1.msra.mxu0 0.0
  %75 = vmatprep.subr.mxu0 0.0
  %76 = vmatpush1.msra.mxu0 0.0
  %77 = vmatprep.subr.mxu0 0.0
  %78 = vmatpush1.msra.mxu0 0.0
  %79 = vmatprep.subr.mxu0 0.0
  %80 = vmatpush1.msra.mxu0 0.0
  %81 = vmatprep.subr.mxu0 0.0
  %82 = vmatpush1.msra.mxu0 0.0
  %83 = vmatprep.subr.mxu0 0.0
  %84 = vmatpush1.msra.mxu0 0.0
  %85 = vmatprep.subr.mxu0 0.0
  %86 = vmatpush1.msra.mxu0 0.0
  %87 = vmatprep.subr.mxu0 0.0
  %88 = vmatpush1.msra.mxu0 0.0
  %89 = vmatprep.subr.mxu0 0.0
  %90 = vmatpush1.msra.mxu0 0.0
  %91 = vmatprep.subr.mxu0 0.0
  %92 = vmatpush1.msra.mxu0 0.0
  %93 = vmatprep.subr.mxu0 0.0
  %94 = vmatpush1.msra.mxu0 0.0
  %95 = vmatprep.subr.mxu0 0.0
  %96 = vmatpush1.msra.mxu0 0.0
  %97 = vmatprep.subr.mxu0 0.0
  %98 = vmatpush1.msra.mxu0 0.0
  %99 = vmatprep.subr.mxu0 0.0
  %100 = vmatpush1.msra.mxu0 0.0
  %101 = vmatprep.subr.mxu0 0.0
  %102 = vmatpush1.msra.mxu0 0.0
  %103 = vmatprep.subr.mxu0 0.0
  %104 = vmatpush1.msra.mxu0 0.0
  %105 = vmatprep.mubr.f32.mxu0 0.0
  %106 = vmatmul.mubr.f32.gmra.mrb[0].mxu0 %v32
  %v107 = vpop.f32.mrb[0].mxu0
  %v108 = vadd.f32 %v28, %v107
  %v109 = vpop.f32.mrb[0].mxu0
  %110 = vmatprep.mubr.f32.mxu0 0.0
  %111 = vmatmul.mubr.f32.gmra.mrb[0].mxu0 %v35
  %v112 = vpop.f32.mrb[0].mxu0
  %v113 = vadd.f32 %v28, %v112
  %v114 = vpop.f32.mrb[0].mxu0
  %115 = vdwg.mxu0
  %v116 = vmax.f32 %v108, 0.0
  %v117 = vmax.f32 %v113, 0.0
  %v118 = vld [vmem:[%s3] sm:$0xff]
  %v119 = vld [vmem:[%s3 + $0x8] sm:$0xff]
  %v120 = vld [vmem:[%s3 + $0x10] sm:$0xff]
  %v121 = vld [vmem:[%s3 + $0x18] sm:$0xff]
  %v122 = vld [vmem:[%s3 + $0x20] sm:$0xff]
  %v123 = vld [vmem:[%s3 + $0x28] sm:$0xff]
  %v124 = vld [vmem:[%s3 + $0x30] sm:$0xff]
  %v125 = vld [vmem:[%s3 + $0x38] sm:$0xff]
  %v126 = vld [vmem:[%s3 + $0x40] sm:$0xff]
  %v127 = vld [vmem:[%s3 + $0x48] sm:$0xff]
  %v128 = vld [vmem:[%s3 + $0x50] sm:$0xff]
  %v129 = vld [vmem:[%s3 + $0x58] sm:$0xff]
  %v130 = vld [vmem:[%s3 + $0x60] sm:$0xff]
  %v131 = vld [vmem:[%s3 + $0x68] sm:$0xff]
  %v132 = vld [vmem:[%s3 + $0x70] sm:$0xff]
  %v133 = vld [vmem:[%s3 + $0x78] sm:$0xff]
  %v134 = vld [vmem:[%s4] sm:$0x1]
  %v136 = vlaneseq
  %v137 = vshrl.u32 %v136, 7
  %v138 = vsub.s32 0, %v137
  %v139 = vrot.slane %v134, %v138
  %141 = vmatprep.subr.mxu0 0.0
  %142 = vmatpush1.msra.mxu0 %v118
  %143 = vmatprep.subr.mxu0 0.0
  %144 = vmatpush1.msra.mxu0 %v119
  %145 = vmatprep.subr.mxu0 0.0
  %146 = vmatpush1.msra.mxu0 %v120
  %147 = vmatprep.subr.mxu0 0.0
  %148 = vmatpush1.msra.mxu0 %v121
  %149 = vmatprep.subr.mxu0 0.0
  %150 = vmatpush1.msra.mxu0 %v122
  %151 = vmatprep.subr.mxu0 0.0
  %152 = vmatpush1.msra.mxu0 %v123
  %153 = vmatprep.subr.mxu0 0.0
  %154 = vmatpush1.msra.mxu0 %v124
  %155 = vmatprep.subr.mxu0 0.0
  %156 = vmatpush1.msra.mxu0 %v125
  %157 = vmatprep.subr.mxu0 0.0
  %158 = vmatpush1.msra.mxu0 %v126
  %159 = vmatprep.subr.mxu0 0.0
  %160 = vmatpush1.msra.mxu0 %v127
  %161 = vmatprep.subr.mxu0 0.0
  %162 = vmatpush1.msra.mxu0 %v128
  %163 = vmatprep.subr.mxu0 0.0
  %164 = vmatpush1.msra.mxu0 %v129
  %165 = vmatprep.subr.mxu0 0.0
  %166 = vmatpush1.msra.mxu0 %v130
  %167 = vmatprep.subr.mxu0 0.0
  %168 = vmatpush1.msra.mxu0 %v131
  %169 = vmatprep.subr.mxu0 0.0
  %170 = vmatpush1.msra.mxu0 %v132
  %171 = vmatprep.subr.mxu0 0.0
  %172 = vmatpush1.msra.mxu0 %v133
  %173 = vmatprep.subr.mxu0 0.0
  %174 = vmatpush1.msra.mxu0 0.0
  %175 = vmatprep.subr.mxu0 0.0
  %176 = vmatpush1.msra.mxu0 0.0
  %177 = vmatprep.subr.mxu0 0.0
  %178 = vmatpush1.msra.mxu0 0.0
  %179 = vmatprep.subr.mxu0 0.0
  %180 = vmatpush1.msra.mxu0 0.0
  %181 = vmatprep.subr.mxu0 0.0
  %182 = vmatpush1.msra.mxu0 0.0
  %183 = vmatprep.subr.mxu0 0.0
  %184 = vmatpush1.msra.mxu0 0.0
  %185 = vmatprep.subr.mxu0 0.0
  %186 = vmatpush1.msra.mxu0 0.0
  %187 = vmatprep.subr.mxu0 0.0
  %188 = vmatpush1.msra.mxu0 0.0
  %189 = vmatprep.subr.mxu0 0.0
  %190 = vmatpush1.msra.mxu0 0.0
  %191 = vmatprep.subr.mxu0 0.0
  %192 = vmatpush1.msra.mxu0 0.0
  %193 = vmatprep.subr.mxu0 0.0
  %194 = vmatpush1.msra.mxu0 0.0
  %195 = vmatprep.subr.mxu0 0.0
  %196 = vmatpush1.msra.mxu0 0.0
  %197 = vmatprep.subr.mxu0 0.0
  %198 = vmatpush1.msra.mxu0 0.0
  %199 = vmatprep.subr.mxu0 0.0
  %200 = vmatpush1.msra.mxu0 0.0
  %201 = vmatprep.subr.mxu0 0.0
  %202 = vmatpush1.msra.mxu0 0.0
  %203 = vmatprep.subr.mxu0 0.0
  %204 = vmatpush1.msra.mxu0 0.0
  %205 = vmatprep.mubr.f32.mxu0 0.0
  %206 = vmatmul.mubr.f32.gmra.mrb[0].mxu0 %v116
  %v207 = vpop.f32.mrb[0].mxu0
  %v208 = vadd.f32 %v139, %v207
  %v209 = vpop.f32.mrb[0].mxu0
  %210 = vmatprep.mubr.f32.mxu0 0.0
  %211 = vmatmul.mubr.f32.gmra.mrb[0].mxu0 %v117
  %v212 = vpop.f32.mrb[0].mxu0
  %v213 = vadd.f32 %v139, %v212
  %v214 = vpop.f32.mrb[0].mxu0
  %215 = vdwg.mxu0
  %vm216 = vcmask 56320
  %217 = vst.msk [vmem:[%s5] sm:$0xff] %vm216, %v208
  %218 = vst.msk [vmem:[%s5 + $0x8] sm:$0xff] %vm216, %v213
  // Predicated region
  $region22: #{actor_critic_forward.1} parent=0 // pred_check
    _
  $region23: #{actor_critic_forward.1} parent=0 // pred_check_branch
    %220 = sbr.rel (0) target = $region25
  $region24: #{actor_critic_forward.1} parent=0 // pred_region
    _
  $region25: #{actor_critic_forward.1} parent=0 // pred_fallthru
    _
  // Predicated region
  $region26: #{actor_critic_forward.1} parent=0 // pred_check
    _
  $region27: #{actor_critic_forward.1} parent=0 // pred_check_branch
    %222 = sbr.rel (0) target = $region29
  $region28: #{actor_critic_forward.1} parent=0 // pred_region
    _
  $region29: #{actor_critic_forward.1} parent=0 // pred_fallthru
    _

</llo_original>
